<compile_context>
chip_gen: v6e
topology: v6e:2x2x1
jax: 0.10.0
libtpu: 0.0.40
codegen_flags: <defaults>
</compile_context>

<pallas_src>
import math

import jax
import jax.numpy as jnp
from jax import lax
from jax.experimental import pallas as pl
from jax.experimental.pallas import tpu as pltpu

RECON_KEY = "reconstructions"
INPUT_KEY = "images"
MASK_KEY = "loss_mask"


class WeightScheduler:
    """Piecewise-constant schedule (pure host control flow, as in the reference)."""

    def __init__(self, boundaries, values):
        self.boundaries = list(boundaries)
        self.values = list(values)

    def __call__(self, iteration):
        for boundary, value in zip(self.boundaries, self.values):
            if iteration < boundary:
                return value
        return self.values[-1]


def _round_up(x, m):
    return ((x + m - 1) // m) * m


def _vmem_budget_bytes():
    """Return (scoped vmem limit, live block budget) per TPU generation."""
    kind = ""
    try:
        kind = jax.devices()[0].device_kind.lower()
    except Exception:
        pass
    if any(tag in kind for tag in ("v4", "v5", "v6")):
        # 128 MiB VMEM generations: big tiles; raise the 16/32 MiB scoped default.
        return 80 * 1024 * 1024, 64 * 1024 * 1024
    # v7x (64 MiB per TensorCore) or unknown backend: stay conservative.
    return 48 * 1024 * 1024, 40 * 1024 * 1024


def _choose_tiles(n_dim, c_dim, m_dim, s_dim, itemsize, block_budget):
    """Pick (n_tile, s_tile, n_s_blocks) that fill the VMEM block budget.

    Live VMEM per grid step ~= 2 buffers * n_tile * s_tile * itemsize *
    (3 * pad8(c_dim) + pad8(m_dim))   [x, recon, out share c_dim; mask m_dim],
    where pad8 accounts for sublane padding of the second-minor block dim.
    """
    c_pad = _round_up(c_dim, 8)
    m_pad = _round_up(m_dim, 8)
    per_elem = 2 * itemsize * (3 * c_pad + m_pad)
    max_ns = max(128, block_budget // per_elem)   # budget for n_tile * s_tile

    if s_dim <= max_ns:
        s_tile, n_s = s_dim, 1
        n_tile = 1
        for d in range(1, n_dim + 1):             # largest divisor of n_dim that fits
            if n_dim % d == 0 and d * s_dim <= max_ns:
                n_tile = d
        # Megacore: ensure >= 2 grid blocks when there is enough work so the
        # "parallel" axes actually land on both TensorCores (v7x).
        if (n_dim // n_tile) * n_s < 2:
            if n_dim >= 2:
                n_tile = max(d for d in range(1, n_dim // 2 + 1) if n_dim % d == 0)
            elif s_dim >= 512:
                s_tile = _round_up(-(-s_dim // 2), 128)   # ceil(S/2), lane-dense
                n_s = pl.cdiv(s_dim, s_tile)
    else:
        n_tile = 1
        s_tile = max(128, (max_ns // 128) * 128)
        n_s = pl.cdiv(s_dim, s_tile)
    return n_tile, s_tile, n_s


def _make_color_kernel(s_dim, s_tile):
    def kernel(w_ref, x_ref, m_ref, r_ref, out_ref, flag_ref):
        """val = mask * |x - r| * schedule_weight ; per-block NaN flag.

        w_ref    : (1,) f32 schedule weight (scalar prefetch, SMEM)
        x_ref    : (n_tile, C, s_tile) inputs            (VMEM)
        m_ref    : (n_tile, 1 or C, s_tile) mask         (VMEM, broadcast in-register)
        r_ref    : (n_tile, C, s_tile) reconstructions   (VMEM)
        out_ref  : (n_tile, C, s_tile) weighted loss     (VMEM)
        flag_ref : (8, 128) per-grid-step NaN flag tile  (VMEM, disjoint per step)
        """
        scale = w_ref[0]
        val = (m_ref[...] * jnp.abs(x_ref[...] - r_ref[...])) * scale
        out_ref[...] = val.astype(out_ref.dtype)

        # NaN check masked to the valid lanes of a (possibly ragged) last
        # spatial block: out-of-bounds lanes hold unspecified data and must
        # not set the flag.  Pallas clips the output writeback by itself.
        si = pl.program_id(1)
        lane = lax.broadcasted_iota(jnp.int32, val.shape, val.ndim - 1)
        valid = lane < (s_dim - si * s_tile)
        nan_f = (jnp.isnan(val) & valid).astype(jnp.float32)
        flag_ref[...] = jnp.broadcast_to(jnp.max(nan_f), flag_ref.shape)

    return kernel


def color_loss_pallas(inputs_img, mask, recon, schedule_weight):
    """color = schedule_weight * mask * |inputs_img - recon|, plus a NaN flag.

    `mask` may be elementwise (same shape) or channel-broadcast (N, 1, H, W);
    the broadcast case is kept compact (never materialized in HBM).
    """
    orig_shape = tuple(inputs_img.shape)
    if tuple(recon.shape) != orig_shape:
        recon = jnp.broadcast_to(recon, orig_shape)
    dtype = jnp.promote_types(inputs_img.dtype, recon.dtype)
    x = inputs_img.astype(dtype)
    r = recon.astype(dtype)
    itemsize = jnp.dtype(dtype).itemsize
    ndim = len(orig_shape)

    if ndim >= 3:
        n0, c0 = orig_shape[0], orig_shape[1]
        s_dim = math.prod(orig_shape[2:])
    elif ndim == 2:
        n0, c0 = 1, orig_shape[0]
        s_dim = orig_shape[1]
    else:
        n0, c0 = 1, 1
        s_dim = int(math.prod(orig_shape)) if ndim else 1

    # Mask classification: keep a channel-broadcast mask compact.
    ms = tuple(mask.shape)
    channel_broadcast = (
        ndim >= 3 and len(ms) == ndim and c0 > 1
        and ms[0] == orig_shape[0] and ms[1] == 1 and ms[2:] == orig_shape[2:]
    )
    if channel_broadcast:
        n_dim, c_dim, m_dim = n0, c0, 1
        m3 = mask.astype(dtype).reshape(n_dim, 1, s_dim)
    else:
        if ms != orig_shape:
            # Rare general-broadcast fallback (correctness over bandwidth).
            mask = jnp.broadcast_to(mask, orig_shape)
        # Fold (N, C) together: minimizes sublane padding of the blocks.
        n_dim, c_dim, m_dim = 1, max(1, n0 * c0), max(1, n0 * c0)
        m3 = mask.astype(dtype).reshape(n_dim, c_dim, s_dim)
    x3 = x.reshape(n_dim, c_dim, s_dim)
    r3 = r.reshape(n_dim, c_dim, s_dim)

    vmem_limit, block_budget = _vmem_budget_bytes()
    n_tile, s_tile, n_s = _choose_tiles(n_dim, c_dim, m_dim, s_dim, itemsize, block_budget)
    grid_n = n_dim // n_tile
    grid = (grid_n, n_s)

    w = jnp.asarray([schedule_weight], dtype=jnp.float32)

    # index_maps receive the scalar-prefetch ref as a trailing positional arg.
    data_spec = pl.BlockSpec((n_tile, c_dim, s_tile), lambda ni, si, w_ref: (ni, 0, si))
    mask_spec = pl.BlockSpec((n_tile, m_dim, s_tile), lambda ni, si, w_ref: (ni, 0, si))
    flag_spec = pl.BlockSpec((8, 128), lambda ni, si, w_ref: (ni, si))

    out3, flags = pl.pallas_call(
        _make_color_kernel(s_dim, s_tile),
        out_shape=(
            jax.ShapeDtypeStruct((n_dim, c_dim, s_dim), dtype),
            jax.ShapeDtypeStruct((grid_n * 8, n_s * 128), jnp.float32),
        ),
        grid_spec=pltpu.PrefetchScalarGridSpec(
            num_scalar_prefetch=1,
            grid=grid,
            in_specs=[data_spec, mask_spec, data_spec],
            out_specs=[data_spec, flag_spec],
        ),
        compiler_params=pltpu.CompilerParams(
            dimension_semantics=("parallel", "parallel"),   # megacore-shardable
            vmem_limit_bytes=vmem_limit,
        ),
    )(w, x3, m3, r3)

    out = out3.reshape(orig_shape)          # pure view reshape, no copy
    nan_flag = jnp.max(flags) > 0.0         # device scalar; no host sync here
    return out, nan_flag


class ColorLoss:
    """Pallas-backed ColorLoss (matches the PyTorch reference forward)."""

    def __init__(self, boundaries, values):
        self.schedule = WeightScheduler(boundaries, values)
        self.last_nan_flag = None

    def forward(self, inputs, output_batch, iteration, check_nan=True):
        reconstructions = output_batch[RECON_KEY]
        weights = inputs[MASK_KEY]
        w = float(self.schedule(iteration))

        color_weighted, nan_flag = color_loss_pallas(
            inputs[INPUT_KEY], weights, reconstructions, w
        )
        # Kept as a device scalar: training loops can pass check_nan=False and
        # poll `last_nan_flag` every N steps to avoid a per-step host sync.
        self.last_nan_flag = nan_flag
        if check_nan:
            if bool(jax.device_get(nan_flag)):
                raise ValueError("[COLOR] NaN detected in loss")
        return dict(color=color_weighted)

    __call__ = forward


if __name__ == "__main__":
    key = jax.random.PRNGKey(0)
    k1, k2, k3 = jax.random.split(key, 3)

    boundaries = [1000, 5000]
    values = [0.0, 0.5, 1.0]
    loss_mod = ColorLoss(boundaries, values)
    iteration = 2000  # -> schedule weight 0.5

    # --- Test 1: elementwise mask, NCHW ---
    N, C, H, W = 2, 4, 16, 16
    x = jax.random.normal(k1, (N, C, H, W), dtype=jnp.float32)
    recon = jax.random.normal(k2, (N, C, H, W), dtype=jnp.float32)
    mask = (jax.random.uniform(k3, (N, C, H, W)) > 0.3).astype(jnp.float32)

    out = loss_mod.forward({INPUT_KEY: x, MASK_KEY: mask}, {RECON_KEY: recon}, iteration)
    color = jax.block_until_ready(out["color"])
    ref = 0.5 * (mask * jnp.abs(x - recon))
    assert color.shape == (N, C, H, W)
    assert jnp.allclose(color, ref, atol=1e-6, rtol=1e-6)

    # --- Test 2: compact broadcast mask (N,1,H,W) + non-128-aligned spatial ---
    xb = jax.random.normal(k2, (1, 3, 30, 30), dtype=jnp.float32)
    rb = jax.random.normal(k3, (1, 3, 30, 30), dtype=jnp.float32)
    mb = (jax.random.uniform(k1, (1, 1, 30, 30)) > 0.5).astype(jnp.float32)
    out_b = loss_mod.forward({INPUT_KEY: xb, MASK_KEY: mb}, {RECON_KEY: rb}, iteration)
    color_b = jax.block_until_ready(out_b["color"])
    ref_b = 0.5 * (mb * jnp.abs(xb - rb))
    assert color_b.shape == (1, 3, 30, 30)
    assert jnp.allclose(color_b, ref_b, atol=1e-6, rtol=1e-6)

    # --- Test 3: NaN detection raises (original module semantics) ---
    x_nan = x.at[0, 0, 3, 5].set(jnp.nan)
    raised = False
    try:
        loss_mod.forward({INPUT_KEY: x_nan, MASK_KEY: mask}, {RECON_KEY: recon}, iteration)
    except ValueError:
        raised = True
    assert raised, "NaN was not detected"

    print("KERNEL_OK")
</pallas_src>

<mosaic_0001>
module attributes {stable_mosaic.version = 11 : i64} {
  func.func @kernel(%arg0: i32, %arg1: i32, %arg2: memref<1xf32, #tpu.memory_space<smem>>, %arg3: memref<1x8x256xf32, #tpu.memory_space<vmem>>, %arg4: memref<1x8x256xf32, #tpu.memory_space<vmem>>, %arg5: memref<1x8x256xf32, #tpu.memory_space<vmem>>, %arg6: memref<1x8x256xf32, #tpu.memory_space<vmem>>, %arg7: memref<8x128xf32, #tpu.memory_space<vmem>>) attributes {dimension_semantics = [#tpu.dimension_semantics<parallel>, #tpu.dimension_semantics<parallel>], iteration_bounds = array<i64: 1, 1>, scalar_prefetch = 1 : i64, scratch_operands = 0 : i64, tpu.core_type = #tpu.core_type<tc>, window_params = [{transform_indices = @transform_0, window_bounds = array<i64: 1, 8, 256>}, {transform_indices = @transform_1, window_bounds = array<i64: 1, 8, 256>}, {transform_indices = @transform_2, window_bounds = array<i64: 1, 8, 256>}, {transform_indices = @transform_3, window_bounds = array<i64: 1, 8, 256>}, {transform_indices = @transform_4, window_bounds = array<i64: 8, 128>}]} {
    %c0 = arith.constant 0 : index
    %0 = memref.load %arg2[%c0] : memref<1xf32, #tpu.memory_space<smem>>
    %c0_0 = arith.constant 0 : index
    %c0_1 = arith.constant 0 : index
    %c0_2 = arith.constant 0 : index
    %1 = vector.load %arg4[%c0_0, %c0_1, %c0_2] : memref<1x8x256xf32, #tpu.memory_space<vmem>>, vector<1x8x256xf32>
    %c0_3 = arith.constant 0 : index
    %c0_4 = arith.constant 0 : index
    %c0_5 = arith.constant 0 : index
    %2 = vector.load %arg3[%c0_3, %c0_4, %c0_5] : memref<1x8x256xf32, #tpu.memory_space<vmem>>, vector<1x8x256xf32>
    %c0_6 = arith.constant 0 : index
    %c0_7 = arith.constant 0 : index
    %c0_8 = arith.constant 0 : index
    %3 = vector.load %arg5[%c0_6, %c0_7, %c0_8] : memref<1x8x256xf32, #tpu.memory_space<vmem>>, vector<1x8x256xf32>
    %4 = arith.subf %2, %3 : vector<1x8x256xf32>
    %5 = math.absf %4 : vector<1x8x256xf32>
    %6 = arith.mulf %1, %5 : vector<1x8x256xf32>
    %7 = vector.broadcast %0 : f32 to vector<1x8x256xf32>
    %8 = arith.mulf %6, %7 : vector<1x8x256xf32>
    %c0_9 = arith.constant 0 : index
    %c0_10 = arith.constant 0 : index
    %c0_11 = arith.constant 0 : index
    %9 = vector.load %arg6[%c0_9, %c0_10, %c0_11] : memref<1x8x256xf32, #tpu.memory_space<vmem>>, vector<1x8x256xf32>
    tpu.vector_store %arg6[%c0_9, %c0_10, %c0_11], %8 {strides = array<i32>} : memref<1x8x256xf32, #tpu.memory_space<vmem>>, vector<1x8x256xf32>,
    %10 = tpu.iota {dimensions = array<i32: 2>} : vector<1x8x256xi32>
    %c256_i32 = arith.constant 256 : i32
    %11 = arith.muli %arg1, %c256_i32 : i32
    %c256_i32_12 = arith.constant 256 : i32
    %12 = arith.subi %c256_i32_12, %11 : i32
    %13 = vector.broadcast %12 : i32 to vector<1x8x256xi32>
    %14 = arith.cmpi slt, %10, %13 : vector<1x8x256xi32>
    %15 = arith.cmpf one, %8, %8 : vector<1x8x256xf32>
    %16 = arith.andi %15, %14 : vector<1x8x256xi1>
    %17 = arith.extui %16 : vector<1x8x256xi1> to vector<1x8x256xi32>
    %18 = arith.sitofp %17 : vector<1x8x256xi32> to vector<1x8x256xf32>
    %19 = vector.shape_cast %18 : vector<1x8x256xf32> to vector<1x1x8x256xf32>
    %cst = arith.constant dense<0xFF800000> : vector<1xf32>
    %20 = vector.multi_reduction <maximumf>, %19, %cst [1, 2, 3] : vector<1x1x8x256xf32> to vector<1xf32>
    %21 = vector.shape_cast %20 : vector<1xf32> to vector<1x1x1x1xf32>
    %22 = vector.extract %21[0, 0, 0, 0] : f32 from vector<1x1x1x1xf32>
    %23 = vector.broadcast %22 : f32 to vector<8x128xf32>
    %c0_13 = arith.constant 0 : index
    %c0_14 = arith.constant 0 : index
    %24 = vector.load %arg7[%c0_13, %c0_14] : memref<8x128xf32, #tpu.memory_space<vmem>>, vector<8x128xf32>
    tpu.vector_store %arg7[%c0_13, %c0_14], %23 {strides = array<i32>} : memref<8x128xf32, #tpu.memory_space<vmem>>, vector<8x128xf32>,
    return
  }
  func.func @transform_0(%arg0: i32, %arg1: i32, %arg2: memref<1xf32, #tpu.memory_space<smem>>) -> (i32, i32, i32) {
    %c0_i32 = arith.constant 0 : i32
    %c0_i32_0 = arith.constant 0 : i32
    return %arg0, %c0_i32, %arg1 : i32, i32, i32
  }
  func.func @transform_1(%arg0: i32, %arg1: i32, %arg2: memref<1xf32, #tpu.memory_space<smem>>) -> (i32, i32, i32) {
    %c0_i32 = arith.constant 0 : i32
    %c0_i32_0 = arith.constant 0 : i32
    return %arg0, %c0_i32, %arg1 : i32, i32, i32
  }
  func.func @transform_2(%arg0: i32, %arg1: i32, %arg2: memref<1xf32, #tpu.memory_space<smem>>) -> (i32, i32, i32) {
    %c0_i32 = arith.constant 0 : i32
    %c0_i32_0 = arith.constant 0 : i32
    return %arg0, %c0_i32, %arg1 : i32, i32, i32
  }
  func.func @transform_3(%arg0: i32, %arg1: i32, %arg2: memref<1xf32, #tpu.memory_space<smem>>) -> (i32, i32, i32) {
    %c0_i32 = arith.constant 0 : i32
    %c0_i32_0 = arith.constant 0 : i32
    return %arg0, %c0_i32, %arg1 : i32, i32, i32
  }
  func.func @transform_4(%arg0: i32, %arg1: i32, %arg2: memref<1xf32, #tpu.memory_space<smem>>) -> (i32, i32) {
    %c0_i32 = arith.constant 0 : i32
    return %arg0, %arg1 : i32, i32
  }
}

</mosaic_0001>

<llo_original>
// kernel: tpu_custom_call.1
$region0: #{tpu_custom_call.1}
  #allocation0 [shape = 'u32[]', space=smem, size = 0x4, offset = 0x4, fixed_abs, tag = 'smem constant byte address 0x4 - core index']
  #allocation1 [shape = 'u32[144,128]{1,0:T(1,128)}', space=vmem, size = 0x12000, scoped, tag = 'internal scratch']
  #allocation2 [shape = 's32[1]{0}', space=sflag, size = 0x4, scoped, tag = 'scoped memory for tpu_custom_call.1']
  #allocation3 [shape = 'f32[1]{0:T(128)S(6)}', space=smem, size = 0x200, scoped, tag = 'prefetched SMEM operand 0']
  %s0 = inlined_call_operand.<no memory space> [shape: f32[1], index: 0, kind: input, shape index: {}]
  %s1 = inlined_call_operand.hbm [shape: f32[1,8,256], index: 1, kind: input, shape index: {}]
  %s2 = inlined_call_operand.hbm [shape: f32[1,8,256], index: 2, kind: input, shape index: {}]
  %s3 = inlined_call_operand.hbm [shape: f32[1,8,256], index: 3, kind: input, shape index: {}]
  %s4 = inlined_call_operand.hbm [shape: f32[1,8,256], index: 4, kind: output, shape index: {0}]
  %s5 = inlined_call_operand.hbm [shape: f32[8,128], index: 5, kind: output, shape index: {1}]
  %6 = xla_tuple %s4, %s5
  %s7 = sld [smem:[#allocation0]]
  $region42: #{tpu_custom_call.1} parent=0
    _
  %s9 = ssub.s32 1, %s7
  %s10 = scalar_select 0, %s9, %s7
  %11 = sst [smem:[#allocation3]] %s0
  $region1: #{tpu_custom_call.1} parent=0
    #allocation4 [shape = 'u8[8192]{0}', space=vmem, size = 0x2000, scoped, tag = 'input window, operand 1, single buffered']
    #allocation5 [shape = 's32[1]{0}', space=sflag, size = 0x4, scoped, tag = 'scoped memory for tpu_custom_call.1']
    #allocation6 [shape = 's32[1]{0}', space=sflag, size = 0x4, scoped, tag = 'scoped memory for tpu_custom_call.1']
    #allocation7 [shape = 'u8[8192]{0}', space=vmem, size = 0x2000, scoped, tag = 'input window, operand 2, single buffered']
    #allocation8 [shape = 's32[1]{0}', space=sflag, size = 0x4, scoped, tag = 'scoped memory for tpu_custom_call.1']
    #allocation9 [shape = 'u8[8192]{0}', space=vmem, size = 0x2000, scoped, tag = 'input window, operand 3, single buffered']
    #allocation10 [shape = 'u8[8192]{0}', space=vmem, size = 0x2000, scoped, tag = 'output window, operand 0, single buffered']
    #allocation11 [shape = 'u8[4096]{0}', space=vmem, size = 0x1000, scoped, tag = 'output window, operand 1, single buffered']
    #allocation12 [shape = 's32[1]{0}', space=sflag, size = 0x4, scoped, tag = 'scoped memory for tpu_custom_call.1']
    %12 = vsyncpa [#allocation5], 0
    %13 = vsyncpa [#allocation8], 0
    %14 = vsyncpa [#allocation6], 0
    %15 = vsyncpa [#allocation12], 0
    // Predicated region
    $region2: #{tpu_custom_call.1} parent=1 // pred_check
      _
    $region3: #{tpu_custom_call.1} parent=1 // pred_check_branch
      %17 = sbr.rel (0) target = $region5
    $region4: #{tpu_custom_call.1} parent=1 // pred_region
      %s19 = ssub.s32 256, 256
      %20 = vsyncadd [#allocation5], %s19
      %s22 = sshll.u32 [#allocation4], 4
      %s23 = int_to_ptr.vmem [resolvable:$true] %s22
      %25 = dma.hbm_to_vmem [thread:$0]  %s1, 256, %s23, [#allocation5]
    $region5: #{tpu_custom_call.1} parent=1 // pred_fallthru
      _
    // Predicated region
    $region6: #{tpu_custom_call.1} parent=1 // pred_check
      _
    $region7: #{tpu_custom_call.1} parent=1 // pred_check_branch
      %27 = sbr.rel (0) target = $region9
    $region8: #{tpu_custom_call.1} parent=1 // pred_region
      %s29 = ssub.s32 256, 256
      %30 = vsyncadd [#allocation8], %s29
      %s32 = sshll.u32 [#allocation7], 4
      %s33 = int_to_ptr.vmem [resolvable:$true] %s32
      %35 = dma.hbm_to_vmem [thread:$0]  %s2, 256, %s33, [#allocation8]
    $region9: #{tpu_custom_call.1} parent=1 // pred_fallthru
      _
    // Predicated region
    $region10: #{tpu_custom_call.1} parent=1 // pred_check
      _
    $region11: #{tpu_custom_call.1} parent=1 // pred_check_branch
      %37 = sbr.rel (0) target = $region13
    $region12: #{tpu_custom_call.1} parent=1 // pred_region
      %s39 = ssub.s32 256, 256
      %40 = vsyncadd [#allocation8], %s39
      %s42 = sshll.u32 [#allocation9], 4
      %s43 = int_to_ptr.vmem [resolvable:$true] %s42
      %45 = dma.hbm_to_vmem [thread:$0]  %s3, 256, %s43, [#allocation8]
    $region13: #{tpu_custom_call.1} parent=1 // pred_fallthru
      _
    // Predicated region
    $region14: #{tpu_custom_call.1} parent=1 // pred_check
      _
    $region15: #{tpu_custom_call.1} parent=1 // pred_check_branch
      %47 = sbr.rel (0) target = $region17
    $region16: #{tpu_custom_call.1} parent=1 // pred_region
      %48 = dma.done [#allocation5], 256
    $region17: #{tpu_custom_call.1} parent=1 // pred_fallthru
      _
    // Predicated region
    $region18: #{tpu_custom_call.1} parent=1 // pred_check
      _
    $region19: #{tpu_custom_call.1} parent=1 // pred_check_branch
      %50 = sbr.rel (0) target = $region21
    $region20: #{tpu_custom_call.1} parent=1 // pred_region
      %51 = dma.done [#allocation8], 256
    $region21: #{tpu_custom_call.1} parent=1 // pred_fallthru
      _
    // Predicated region
    $region22: #{tpu_custom_call.1} parent=1 // pred_check
      _
    $region23: #{tpu_custom_call.1} parent=1 // pred_check_branch
      %53 = sbr.rel (0) target = $region25
    $region24: #{tpu_custom_call.1} parent=1 // pred_region
      %54 = dma.done [#allocation8], 256
    $region25: #{tpu_custom_call.1} parent=1 // pred_fallthru
      _
    %s55 = sld [smem:[#allocation3]]
    %v56 = vld [vmem:[#allocation7] sm:$0xff]
    %v57 = vld [vmem:[#allocation7 + $0x8] sm:$0xff]
    %v58 = vld [vmem:[#allocation4] sm:$0xff]
    %v59 = vld [vmem:[#allocation4 + $0x8] sm:$0xff]
    %v60 = vld [vmem:[#allocation9] sm:$0xff]
    %v61 = vld [vmem:[#allocation9 + $0x8] sm:$0xff]
    %v62 = vsub.f32 %v58, %v60
    %v63 = vsub.f32 %v59, %v61
    %v64 = vand.u32 2147483647, %v62
    %v65 = vand.u32 2147483647, %v63
    %v66 = vmul.f32 %v56, %v64
    %v67 = vmul.f32 %v57, %v65
    %v68 = vstv %s55
    %v69 = vmul.f32 %v66, %v68
    %v70 = vmul.f32 %v67, %v68
    %71 = vst [vmem:[#allocation10] sm:$0xff] %v69
    %72 = vst [vmem:[#allocation10 + $0x8] sm:$0xff] %v70
    %v73 = vlaneseq
    %v74 = vand.u32 %v73, 127
    %v75 = vadd.s32 %v74, 128
    %s76 = smul.u32 0, 256
    %s77 = ssub.s32 256, %s76
    %v78 = vstv %s77
    %vm79 = vcmp.lt.s32.totalorder %v74, %v78
    %vm80 = vcmp.lt.s32.totalorder %v75, %v78
    %vm81 = vcmp.ne.f32.partialorder %v69, %v69
    %vm82 = vcmp.ne.f32.partialorder %v70, %v70
    %vm83 = vmand %vm81, %vm79
    %vm84 = vmand %vm82, %vm80
    %v85 = vsel %vm83, 1, 0
    %v86 = vsel %vm84, 1, 0
    %v87 = vcvt.s32.f32 %v85
    %v88 = vcvt.s32.f32 %v86
    %v89 = vmax.f32 %v87, %v88
    %90 = vmax.xlane.f32.xlu0 %v89
    %v91 = vpop.xlane.xlu0 %90
    %v92 = vrot.slane %v91, 4
    %v93 = vmax.f32 %v91, %v92
    %v94 = vrot.slane %v93, 2
    %v95 = vmax.f32 %v93, %v94
    %v96 = vrot.slane %v95, 1
    %v97 = vmax.f32 %v95, %v96
    %s98 = vtos %v97
    %v99 = vstv %s98
    %100 = vst [vmem:[#allocation11] sm:$0xff] %v99
    // Predicated region
    $region26: #{tpu_custom_call.1} parent=1 // pred_check
      _
    $region27: #{tpu_custom_call.1} parent=1 // pred_check_branch
      %102 = sbr.rel (0) target = $region29
    $region28: #{tpu_custom_call.1} parent=1 // pred_region
      %s104 = ssub.s32 256, 256
      %105 = vsyncadd [#allocation6], %s104
      %s107 = sshll.u32 [#allocation10], 4
      %s108 = int_to_ptr.vmem [resolvable:$true] %s107
      %110 = dma.vmem_to_hbm [thread:$0]  %s108, 256, %s4, [#allocation6]
    $region29: #{tpu_custom_call.1} parent=1 // pred_fallthru
      _
    // Predicated region
    $region30: #{tpu_custom_call.1} parent=1 // pred_check
      _
    $region31: #{tpu_custom_call.1} parent=1 // pred_check_branch
      %112 = sbr.rel (0) target = $region33
    $region32: #{tpu_custom_call.1} parent=1 // pred_region
      %s114 = ssub.s32 128, 128
      %115 = vsyncadd [#allocation12], %s114
      %s117 = sshll.u32 [#allocation11], 4
      %s118 = int_to_ptr.vmem [resolvable:$true] %s117
      %120 = dma.vmem_to_hbm [thread:$0]  %s118, 128, %s5, [#allocation12]
    $region33: #{tpu_custom_call.1} parent=1 // pred_fallthru
      _
    // Predicated region
    $region34: #{tpu_custom_call.1} parent=1 // pred_check
      _
    $region35: #{tpu_custom_call.1} parent=1 // pred_check_branch
      %122 = sbr.rel (0) target = $region37
    $region36: #{tpu_custom_call.1} parent=1 // pred_region
      %123 = dma.done [#allocation6], 256
    $region37: #{tpu_custom_call.1} parent=1 // pred_fallthru
      _
    // Predicated region
    $region38: #{tpu_custom_call.1} parent=1 // pred_check
      _
    $region39: #{tpu_custom_call.1} parent=1 // pred_check_branch
      %125 = sbr.rel (0) target = $region41
    $region40: #{tpu_custom_call.1} parent=1 // pred_region
      %126 = dma.done [#allocation12], 128
    $region41: #{tpu_custom_call.1} parent=1 // pred_fallthru
      _
    %127 = vsyncpa [#allocation5], 1
    %128 = vsyncpa [#allocation8], 1
    %129 = vsyncpa [#allocation6], 1
    %130 = vsyncpa [#allocation12], 1

</llo_original>
